<compile_context>
chip_gen: v5e
topology: v5e:2x2
jax: 0.10.0
libtpu: 0.0.40
codegen_flags: <defaults>
</compile_context>

<pallas_src>
import functools

import jax
import jax.numpy as jnp
import numpy as np
from jax import lax
from jax.experimental import pallas as pl
from jax.experimental.pallas import tpu as pltpu


# maps rows (each (Nb*C, F*T)), all pre-folded / pre-tiled on the host:
#   0: (freq tap f-1) * ssn_scale, zeroed at f==0     (pad + roll-wrap mask)
#   1: (freq tap f  ) * ssn_scale
#   2: (freq tap f+1) * ssn_scale, zeroed at f==F-1
#   3: ssn bias
#   4: (temp tap t-1) * bn2_scale, zeroed at t==0
#   5: (temp tap t  ) * bn2_scale
#   6: (temp tap t+1) * bn2_scale, zeroed at t==T-1
#   7: bn2 bias
def _transition_kernel(x_ref, maps_ref, w_ref, o_ref, *, F, T):
    FT = F * T
    x = x_ref[...]                               # (R, FT) f32, R = Nb*C

    wf0, wf1, wf2 = maps_ref[0], maps_ref[1], maps_ref[2]
    ssn_b = maps_ref[3]
    wt0, wt1, wt2 = maps_ref[4], maps_ref[5], maps_ref[6]
    o2b = maps_ref[7]

    # ---- freq depthwise conv (3,1) pad (1,0), fused with the SSN affine.
    #      +-T lane rotation (XLU); circular wrap at f==0 / f==F-1 is killed by
    #      the edge-zeroed taps (each row owns its full FT, so rolls never mix
    #      rows / batch elements). ----
    x_fm1 = pltpu.roll(x, T, axis=1)             # value at f-1
    x_fp1 = pltpu.roll(x, FT - T, axis=1)        # value at f+1
    aux = wf0 * x_fm1 + wf1 * x + wf2 * x_fp1 + ssn_b

    # ---- mean over frequency, kept broadcast over F: cyclic shift-accumulate
    #      with period T along the flattened (f, t) axis -> log2(F) XLU rolls. ----
    s = aux
    if F & (F - 1) == 0:                         # power-of-two F
        shift = T
        while shift < FT:
            s = s + pltpu.roll(s, shift, axis=1)
            shift *= 2
    else:                                        # generic fallback
        for k in range(1, F):
            s = s + pltpu.roll(aux, (k * T) % FT, axis=1)
    m = s * (1.0 / F)                            # constant over f at each t

    # ---- temporal depthwise conv (1,3) pad (0,1); bn2 scale folded into taps,
    #      wraps masked by the t-edge-zeroed taps.  "swish" is nn.ReLU. ----
    m_tm1 = pltpu.roll(m, 1, axis=1)
    m_tp1 = pltpu.roll(m, FT - 1, axis=1)
    y = jnp.maximum(wt0 * m_tm1 + wt1 * m + wt2 * m_tp1 + o2b, 0.0)

    # ---- conv1x1_2: channel mixing for every batch row of the block in ONE
    #      MXU matmul against a block-diagonal (R, R) weight. ----
    z = jnp.dot(w_ref[...], y, preferred_element_type=jnp.float32,
                precision=lax.Precision.HIGHEST)

    # ---- residual add (aux already broadcast over F) + final ReLU ----
    o_ref[...] = jnp.maximum(aux + z, 0.0).astype(o_ref.dtype)


def _choose_nb(N, C):
    """Batch elements per grid step: >=512 rows per block if N allows, but keep
    >=2 grid steps so v7x's two TensorCores both get work."""
    nb = max(1, min(N, max(1, 512 // C)))
    if N >= 2:
        nb = min(nb, (N + 1) // 2)
    return nb


def transition_block(x, maps, w11, *, nb=None):
    N, C, F, T = x.shape
    FT = F * T
    if nb is None:
        nb = _choose_nb(N, C)
    steps = -(-N // nb)                     # cdiv
    Np = steps * nb
    R = nb * C

    xf = x.reshape(N, C, FT)
    if Np != N:                             # pad batch to a multiple of nb
        xf = jnp.concatenate(
            [xf, jnp.zeros((Np - N, C, FT), x.dtype)], axis=0)
    xf = xf.reshape(Np * C, FT)             # contiguous -> free

    maps_t = jnp.tile(maps, (1, nb, 1))                    # (8, R, FT), resident
    w_big = jnp.kron(jnp.eye(nb, dtype=w11.dtype), w11)    # (R, R) block-diag

    kernel = functools.partial(_transition_kernel, F=F, T=T)
    out = pl.pallas_call(
        kernel,
        out_shape=jax.ShapeDtypeStruct((Np * C, FT), x.dtype),
        grid_spec=pltpu.PrefetchScalarGridSpec(
            num_scalar_prefetch=0,
            grid=(steps,),
            in_specs=[
                pl.BlockSpec((R, FT), lambda n: (n, 0)),
                pl.BlockSpec(maps_t.shape, lambda n: (0, 0, 0)),   # resident params
                pl.BlockSpec(w_big.shape, lambda n: (0, 0)),       # resident params
            ],
            out_specs=pl.BlockSpec((R, FT), lambda n: (n, 0)),
        ),
        compiler_params=pltpu.CompilerParams(dimension_semantics=("parallel",)),
    )(xf, maps_t, w_big)
    return out.reshape(Np, C, F, T)[:N]


# ----------------------------- parameter setup -----------------------------

def init_params(key, C, S):
    eps = 1e-5
    ks = jax.random.split(key, 11)
    Wf = jax.random.normal(ks[0], (C, 1, 3, 1), jnp.float32) * 0.5    # freq dw
    Wt = jax.random.normal(ks[1], (C, 1, 1, 3), jnp.float32) * 0.5    # temp dw
    W11 = jax.random.normal(ks[2], (C, C, 1, 1), jnp.float32) * 0.3   # 1x1
    g1 = 1.0 + 0.1 * jax.random.normal(ks[3], (C * S,), jnp.float32)  # ssn BN
    b1 = 0.1 * jax.random.normal(ks[4], (C * S,), jnp.float32)
    rm1 = 0.1 * jax.random.normal(ks[5], (C * S,), jnp.float32)
    rv1 = 1.0 + 0.1 * jax.random.uniform(ks[6], (C * S,), jnp.float32)
    g2 = 1.0 + 0.1 * jax.random.normal(ks[7], (C,), jnp.float32)      # bn2
    b2 = 0.1 * jax.random.normal(ks[8], (C,), jnp.float32)
    rm2 = 0.1 * jax.random.normal(ks[9], (C,), jnp.float32)
    rv2 = 1.0 + 0.1 * jax.random.uniform(ks[10], (C,), jnp.float32)
    return dict(Wf=Wf, Wt=Wt, W11=W11, g1=g1, b1=b1, rm1=rm1, rv1=rv1,
                g2=g2, b2=b2, rm2=rm2, rv2=rv2, eps=eps)


def pack_kernel_params(p, C, S, F, T):
    """Pre-fold everything into one lane-dense (8, C, F*T) map + (C, C) W11."""
    eps = p["eps"]
    FT = F * T
    wf = p["Wf"][:, 0, :, 0]                          # (C, 3) freq taps
    wt = p["Wt"][:, 0, 0, :]                          # (C, 3) temporal taps
    w11 = p["W11"][:, :, 0, 0]                        # (C, C) [out, in]

    s1 = p["g1"] / jnp.sqrt(p["rv1"] + eps)           # (C*S,) SSN affine
    o1 = p["b1"] - p["rm1"] * s1
    s2 = p["g2"] / jnp.sqrt(p["rv2"] + eps)           # (C,)   bn2 affine
    o2 = p["b2"] - p["rm2"] * s2

    f_idx = jnp.arange(FT) // T                       # flat index -> freq bin
    t_idx = jnp.arange(FT) % T                        # flat index -> time step
    ones = jnp.ones((FT,), jnp.float32)
    not_f0 = (f_idx > 0).astype(jnp.float32)
    not_fN = (f_idx < F - 1).astype(jnp.float32)
    not_t0 = (t_idx > 0).astype(jnp.float32)
    not_tN = (t_idx < T - 1).astype(jnp.float32)

    # SSN: view(N, C*S, F//S, T) => BN channel for (c, f) is c*S + f // (F//S)
    grp = f_idx // (F // S)                           # (FT,) in [0, S)
    ssn_s = s1.reshape(C, S)[:, grp]                  # (C, FT)
    ssn_b = o1.reshape(C, S)[:, grp]

    maps = jnp.stack([
        wf[:, 0:1] * ssn_s * not_f0[None, :],         # 0: freq tap f-1 * ssn_s
        wf[:, 1:2] * ssn_s,                           # 1: freq tap f   * ssn_s
        wf[:, 2:3] * ssn_s * not_fN[None, :],         # 2: freq tap f+1 * ssn_s
        ssn_b,                                        # 3: ssn bias
        (wt[:, 0] * s2)[:, None] * not_t0[None, :],   # 4: temp tap t-1 (edge-zeroed)
        (wt[:, 1] * s2)[:, None] * ones[None, :],     # 5: temp tap t
        (wt[:, 2] * s2)[:, None] * not_tN[None, :],   # 6: temp tap t+1 (edge-zeroed)
        o2[:, None] * ones[None, :],                  # 7: bn2 bias
    ], axis=0)
    return maps, w11


# --------------------------- pure-JAX reference ----------------------------

def reference(x, p, S):
    eps = p["eps"]
    N, C, F, T = x.shape
    dn = ("NCHW", "OIHW", "NCHW")
    hp = lax.Precision.HIGHEST
    out = lax.conv_general_dilated(x, p["Wf"], (1, 1), ((1, 1), (0, 0)),
                                   dimension_numbers=dn, feature_group_count=C,
                                   precision=hp)
    o = out.reshape(N, C * S, F // S, T)
    o = (o - p["rm1"][None, :, None, None]) / jnp.sqrt(p["rv1"][None, :, None, None] + eps)
    o = o * p["g1"][None, :, None, None] + p["b1"][None, :, None, None]
    out = o.reshape(N, C, F, T)
    aux = out
    out = out.mean(axis=2, keepdims=True)
    out = lax.conv_general_dilated(out, p["Wt"], (1, 1), ((0, 0), (1, 1)),
                                   dimension_numbers=dn, feature_group_count=C,
                                   precision=hp)
    out = (out - p["rm2"][None, :, None, None]) / jnp.sqrt(p["rv2"][None, :, None, None] + eps)
    out = out * p["g2"][None, :, None, None] + p["b2"][None, :, None, None]
    out = jnp.maximum(out, 0.0)
    out = lax.conv_general_dilated(out, p["W11"], (1, 1), ((0, 0), (0, 0)),
                                   dimension_numbers=dn, precision=hp)
    out = aux + out
    return jnp.maximum(out, 0.0)


if __name__ == "__main__":
    N, C, F, T, S = 2, 8, 16, 16, 4   # planes=8, sub=4, temp_pad=(0,1)
    key = jax.random.PRNGKey(0)
    kx, kp = jax.random.split(key)
    x = jax.random.normal(kx, (N, C, F, T), jnp.float32)
    params = init_params(kp, C, S)
    maps, w11 = pack_kernel_params(params, C, S, F, T)

    out = transition_block(x, maps, w11)
    out = jax.block_until_ready(out)

    ref = reference(x, params, S)
    np.testing.assert_allclose(np.asarray(out), np.asarray(ref),
                               rtol=1e-4, atol=1e-4)
    print("KERNEL_OK")
</pallas_src>

<mosaic_0001>
module attributes {stable_mosaic.version = 11 : i64} {
  func.func @_transition_kernel(%arg0: i32, %arg1: memref<8x256xf32, #tpu.memory_space<vmem>>, %arg2: memref<8x8x256xf32, #tpu.memory_space<vmem>>, %arg3: memref<8x8xf32, #tpu.memory_space<vmem>>, %arg4: memref<8x256xf32, #tpu.memory_space<vmem>>) attributes {dimension_semantics = [#tpu.dimension_semantics<parallel>], iteration_bounds = array<i64: 2>, scalar_prefetch = 0 : i64, scratch_operands = 0 : i64, tpu.core_type = #tpu.core_type<tc>, window_params = [{transform_indices = @transform_0, window_bounds = array<i64: 8, 256>}, {pipeline_mode = #tpu.pipeline_mode<synchronous>, transform_indices = @transform_1, window_bounds = array<i64: 8, 8, 256>}, {pipeline_mode = #tpu.pipeline_mode<synchronous>, transform_indices = @transform_2, window_bounds = array<i64: 8, 8>}, {transform_indices = @transform_3, window_bounds = array<i64: 8, 256>}]} {
    %c0 = arith.constant 0 : index
    %c0_0 = arith.constant 0 : index
    %0 = vector.load %arg1[%c0, %c0_0] : memref<8x256xf32, #tpu.memory_space<vmem>>, vector<8x256xf32>
    %c0_1 = arith.constant 0 : index
    %c0_2 = arith.constant 0 : index
    %c0_3 = arith.constant 0 : index
    %1 = vector.load %arg2[%c0_1, %c0_2, %c0_3] : memref<8x8x256xf32, #tpu.memory_space<vmem>>, vector<1x8x256xf32>
    %2 = vector.shape_cast %1 : vector<1x8x256xf32> to vector<8x256xf32>
    %c1 = arith.constant 1 : index
    %c0_4 = arith.constant 0 : index
    %c0_5 = arith.constant 0 : index
    %3 = vector.load %arg2[%c1, %c0_4, %c0_5] : memref<8x8x256xf32, #tpu.memory_space<vmem>>, vector<1x8x256xf32>
    %4 = vector.shape_cast %3 : vector<1x8x256xf32> to vector<8x256xf32>
    %c2 = arith.constant 2 : index
    %c0_6 = arith.constant 0 : index
    %c0_7 = arith.constant 0 : index
    %5 = vector.load %arg2[%c2, %c0_6, %c0_7] : memref<8x8x256xf32, #tpu.memory_space<vmem>>, vector<1x8x256xf32>
    %6 = vector.shape_cast %5 : vector<1x8x256xf32> to vector<8x256xf32>
    %c3 = arith.constant 3 : index
    %c0_8 = arith.constant 0 : index
    %c0_9 = arith.constant 0 : index
    %7 = vector.load %arg2[%c3, %c0_8, %c0_9] : memref<8x8x256xf32, #tpu.memory_space<vmem>>, vector<1x8x256xf32>
    %8 = vector.shape_cast %7 : vector<1x8x256xf32> to vector<8x256xf32>
    %c4 = arith.constant 4 : index
    %c0_10 = arith.constant 0 : index
    %c0_11 = arith.constant 0 : index
    %9 = vector.load %arg2[%c4, %c0_10, %c0_11] : memref<8x8x256xf32, #tpu.memory_space<vmem>>, vector<1x8x256xf32>
    %10 = vector.shape_cast %9 : vector<1x8x256xf32> to vector<8x256xf32>
    %c5 = arith.constant 5 : index
    %c0_12 = arith.constant 0 : index
    %c0_13 = arith.constant 0 : index
    %11 = vector.load %arg2[%c5, %c0_12, %c0_13] : memref<8x8x256xf32, #tpu.memory_space<vmem>>, vector<1x8x256xf32>
    %12 = vector.shape_cast %11 : vector<1x8x256xf32> to vector<8x256xf32>
    %c6 = arith.constant 6 : index
    %c0_14 = arith.constant 0 : index
    %c0_15 = arith.constant 0 : index
    %13 = vector.load %arg2[%c6, %c0_14, %c0_15] : memref<8x8x256xf32, #tpu.memory_space<vmem>>, vector<1x8x256xf32>
    %14 = vector.shape_cast %13 : vector<1x8x256xf32> to vector<8x256xf32>
    %c7 = arith.constant 7 : index
    %c0_16 = arith.constant 0 : index
    %c0_17 = arith.constant 0 : index
    %15 = vector.load %arg2[%c7, %c0_16, %c0_17] : memref<8x8x256xf32, #tpu.memory_space<vmem>>, vector<1x8x256xf32>
    %16 = vector.shape_cast %15 : vector<1x8x256xf32> to vector<8x256xf32>
    %c16_i32 = arith.constant 16 : i32
    %17 = tpu.dynamic_rotate %0 by %c16_i32 dim 1 : vector<8x256xf32>, i32 -> vector<8x256xf32>
    %c240_i32 = arith.constant 240 : i32
    %18 = tpu.dynamic_rotate %0 by %c240_i32 dim 1 : vector<8x256xf32>, i32 -> vector<8x256xf32>
    %19 = arith.mulf %2, %17 : vector<8x256xf32>
    %20 = arith.mulf %4, %0 : vector<8x256xf32>
    %21 = arith.addf %19, %20 : vector<8x256xf32>
    %22 = arith.mulf %6, %18 : vector<8x256xf32>
    %23 = arith.addf %21, %22 : vector<8x256xf32>
    %24 = arith.addf %23, %8 : vector<8x256xf32>
    %c16_i32_18 = arith.constant 16 : i32
    %25 = tpu.dynamic_rotate %24 by %c16_i32_18 dim 1 : vector<8x256xf32>, i32 -> vector<8x256xf32>
    %26 = arith.addf %24, %25 : vector<8x256xf32>
    %c32_i32 = arith.constant 32 : i32
    %27 = tpu.dynamic_rotate %26 by %c32_i32 dim 1 : vector<8x256xf32>, i32 -> vector<8x256xf32>
    %28 = arith.addf %26, %27 : vector<8x256xf32>
    %c64_i32 = arith.constant 64 : i32
    %29 = tpu.dynamic_rotate %28 by %c64_i32 dim 1 : vector<8x256xf32>, i32 -> vector<8x256xf32>
    %30 = arith.addf %28, %29 : vector<8x256xf32>
    %c128_i32 = arith.constant 128 : i32
    %31 = tpu.dynamic_rotate %30 by %c128_i32 dim 1 : vector<8x256xf32>, i32 -> vector<8x256xf32>
    %32 = arith.addf %30, %31 : vector<8x256xf32>
    %cst = arith.constant 6.250000e-02 : f32
    %33 = vector.broadcast %cst : f32 to vector<8x256xf32>
    %34 = arith.mulf %32, %33 : vector<8x256xf32>
    %c1_i32 = arith.constant 1 : i32
    %35 = tpu.dynamic_rotate %34 by %c1_i32 dim 1 : vector<8x256xf32>, i32 -> vector<8x256xf32>
    %c255_i32 = arith.constant 255 : i32
    %36 = tpu.dynamic_rotate %34 by %c255_i32 dim 1 : vector<8x256xf32>, i32 -> vector<8x256xf32>
    %37 = arith.mulf %10, %35 : vector<8x256xf32>
    %38 = arith.mulf %12, %34 : vector<8x256xf32>
    %39 = arith.addf %37, %38 : vector<8x256xf32>
    %40 = arith.mulf %14, %36 : vector<8x256xf32>
    %41 = arith.addf %39, %40 : vector<8x256xf32>
    %42 = arith.addf %41, %16 : vector<8x256xf32>
    %cst_19 = arith.constant 0.000000e+00 : f32
    %43 = vector.broadcast %cst_19 : f32 to vector<8x256xf32>
    %44 = arith.maximumf %42, %43 : vector<8x256xf32>
    %c0_20 = arith.constant 0 : index
    %c0_21 = arith.constant 0 : index
    %45 = vector.load %arg3[%c0_20, %c0_21] : memref<8x8xf32, #tpu.memory_space<vmem>>, vector<8x8xf32>
    %cst_22 = arith.constant dense<0.000000e+00> : vector<8x256xf32>
    %46 = tpu.matmul %45, %44, %cst_22 {dimension_numbers = #tpu.dot_dimension_numbers<[1], [0], [0], [1], [0, 0, 1, 1], [], []>, precision = #tpu.contract_precision<fp32>} : vector<8x8xf32>, vector<8x256xf32>, vector<8x256xf32> -> vector<8x256xf32>
    %47 = arith.addf %24, %46 : vector<8x256xf32>
    %cst_23 = arith.constant 0.000000e+00 : f32
    %48 = vector.broadcast %cst_23 : f32 to vector<8x256xf32>
    %49 = arith.maximumf %47, %48 : vector<8x256xf32>
    %c0_24 = arith.constant 0 : index
    %c0_25 = arith.constant 0 : index
    %50 = vector.load %arg4[%c0_24, %c0_25] : memref<8x256xf32, #tpu.memory_space<vmem>>, vector<8x256xf32>
    tpu.vector_store %arg4[%c0_24, %c0_25], %49 {strides = array<i32>} : memref<8x256xf32, #tpu.memory_space<vmem>>, vector<8x256xf32>,
    return
  }
  func.func @transform_0(%arg0: i32) -> (i32, i32) {
    %c0_i32 = arith.constant 0 : i32
    %c0_i32_0 = arith.constant 0 : i32
    return %arg0, %c0_i32 : i32, i32
  }
  func.func @transform_1(%arg0: i32) -> (i32, i32, i32) {
    %c0_i32 = arith.constant 0 : i32
    %c0_i32_0 = arith.constant 0 : i32
    %c0_i32_1 = arith.constant 0 : i32
    %c0_i32_2 = arith.constant 0 : i32
    return %c0_i32, %c0_i32_0, %c0_i32_1 : i32, i32, i32
  }
  func.func @transform_2(%arg0: i32) -> (i32, i32) {
    %c0_i32 = arith.constant 0 : i32
    %c0_i32_0 = arith.constant 0 : i32
    %c0_i32_1 = arith.constant 0 : i32
    return %c0_i32, %c0_i32_0 : i32, i32
  }
  func.func @transform_3(%arg0: i32) -> (i32, i32) {
    %c0_i32 = arith.constant 0 : i32
    %c0_i32_0 = arith.constant 0 : i32
    return %arg0, %c0_i32 : i32, i32
  }
}

</mosaic_0001>

<llo_original>
// kernel: tpu_custom_call.1
$region0: #{tpu_custom_call.1}
  #allocation0 [shape = 'u32[]', space=smem, size = 0x4, offset = 0x4, fixed_abs, tag = 'smem constant byte address 0x4 - core index']
  #allocation1 [shape = 'u32[72,128]{1,0:T(1,128)}', space=vmem, size = 0x9000, scoped, tag = 'internal scratch']
  %s0 = inlined_call_operand.hbm [shape: f32[16,256], index: 0, kind: input, shape index: {}]
  %s1 = inlined_call_operand.hbm [shape: f32[8,8,256], index: 1, kind: input, shape index: {}]
  %s2 = inlined_call_operand.hbm [shape: f32[8,8], index: 2, kind: input, shape index: {}]
  %s3 = inlined_call_operand.hbm [shape: f32[16,256], index: 3, kind: output, shape index: {}]
  %s4 = sld [smem:[#allocation0]]
  $region57: #{tpu_custom_call.1} parent=0
    _
  %s6 = ssub.s32 1, %s4
  %s7 = scalar_select 0, %s6, %s4
  $region1: #{tpu_custom_call.1} parent=0
    #allocation2 [shape = 'u8[16384]{0}', space=vmem, size = 0x4000, scoped, tag = 'input window, operand 0']
    #allocation3 [shape = 's32[2]{0}', space=sflag, size = 0x8, scoped, tag = 'scoped memory for tpu_custom_call.1']
    #allocation4 [shape = 's32[2]{0}', space=sflag, size = 0x8, scoped, tag = 'scoped memory for tpu_custom_call.1']
    #allocation5 [shape = 'u8[65536]{0}', space=vmem, size = 0x10000, scoped, tag = 'input window, operand 1, single buffered']
    #allocation6 [shape = 's32[1]{0}', space=sflag, size = 0x4, scoped, tag = 'scoped memory for tpu_custom_call.1']
    #allocation7 [shape = 'u8[4096]{0}', space=vmem, size = 0x1000, scoped, tag = 'input window, operand 2, single buffered']
    #allocation8 [shape = 'u8[16384]{0}', space=vmem, size = 0x4000, scoped, tag = 'output window, operand 0']
    %8 = vsyncpa [#allocation3], 0
    %s9 = scalar_lea.sflag [#allocation3], 1
    %10 = vsyncpa %s9, 0
    %11 = vsyncpa [#allocation6], 0
    %12 = vsyncpa [#allocation4], 0
    %s13 = scalar_lea.sflag [#allocation4], 1
    %14 = vsyncpa %s13, 0
    loop: start=0, step=1, limit=4
    $region2: #{tpu_custom_call.1} parent=1 // loop_pre_header
      _
    $region3: #{tpu_custom_call.1} parent=1 // loop_header
      %s16 = sphi 0, %s20
      %p17 = scmp.ge.s32.totalorder %s16, 4
      %s26 = sphi 0, %s28
      %s29 = sphi 0, %s26
      %s30 = sphi 0, %s29
      %s46 = sphi 0, %s30
      %s50 = sphi 0, %s50
      %s52 = sphi 0, %s50
      %s53 = sphi 0, %s52
      %s67 = sphi 0, %s53
      %s71 = sphi 0, %s71
      %s73 = sphi 0, %s71
      %s74 = sphi 0, %s73
      %s88 = sphi 0, %s74
      %s94 = sphi 0, %s96
      %s97 = sphi 0, %s94
      %s98 = sphi 0, %s97
      %s114 = sphi 0, %s98
    $region4: #{tpu_custom_call.1} parent=1 // loop_header_branch
      %19 = sbr.rel (%p17) target = $region8
    $region5: #{tpu_custom_call.1} parent=1 // loop_body
      %s21 = ssub.s32 %s16, 1
      %s22 = ssub.s32 %s16, 2
      %s23 = sadd.s32 %s16, 1
      %s24 = ssub.s32 %s16, %s23
      %p25 = scmp.eq.s32.totalorder %s24, 0
      %s27 = sadd.s32 %s26, 1
      %s28 = scalar_select %p25, %s26, %s27
      %p31 = pneg %p25
      %p32 = scmp.eq.s32.totalorder %s16, 1
      %p33 = por %p31, %p32
      %p34 = scmp.ne.s32.totalorder %s26, %s29
      %p35 = scmp.eq.s32.totalorder %s16, 0
      %p36 = por %p34, %p35
      %p37 = scmp.ne.s32.totalorder %s26, %s29
      %p38 = scmp.eq.s32.totalorder %s21, 1
      %p39 = por %p37, %p38
      %p40 = scmp.ne.s32.totalorder %s29, %s30
      %p41 = scmp.eq.s32.totalorder %s21, 0
      %p42 = por %p40, %p41
      %p43 = scmp.ne.s32.totalorder %s29, %s30
      %p44 = scmp.eq.s32.totalorder %s22, 1
      %p45 = por %p43, %p44
      %p47 = scmp.ne.s32.totalorder %s30, %s46
      %p48 = scmp.eq.s32.totalorder %s22, 0
      %p49 = por %p47, %p48
      %s51 = sadd.s32 %s50, 1
      %p54 = scmp.eq.s32.totalorder %s16, 1
      %p55 = scmp.ne.s32.totalorder %s50, %s52
      %p56 = scmp.eq.s32.totalorder %s16, 0
      %p57 = por %p55, %p56
      %p58 = scmp.ne.s32.totalorder %s50, %s52
      %p59 = scmp.eq.s32.totalorder %s21, 1
      %p60 = por %p58, %p59
      %p61 = scmp.ne.s32.totalorder %s52, %s53
      %p62 = scmp.eq.s32.totalorder %s21, 0
      %p63 = por %p61, %p62
      %p64 = scmp.ne.s32.totalorder %s52, %s53
      %p65 = scmp.eq.s32.totalorder %s22, 1
      %p66 = por %p64, %p65
      %p68 = scmp.ne.s32.totalorder %s53, %s67
      %p69 = scmp.eq.s32.totalorder %s22, 0
      %p70 = por %p68, %p69
      %s72 = sadd.s32 %s71, 1
      %p75 = scmp.eq.s32.totalorder %s16, 1
      %p76 = scmp.ne.s32.totalorder %s71, %s73
      %p77 = scmp.eq.s32.totalorder %s16, 0
      %p78 = por %p76, %p77
      %p79 = scmp.ne.s32.totalorder %s71, %s73
      %p80 = scmp.eq.s32.totalorder %s21, 1
      %p81 = por %p79, %p80
      %p82 = scmp.ne.s32.totalorder %s73, %s74
      %p83 = scmp.eq.s32.totalorder %s21, 0
      %p84 = por %p82, %p83
      %p85 = scmp.ne.s32.totalorder %s73, %s74
      %p86 = scmp.eq.s32.totalorder %s22, 1
      %p87 = por %p85, %p86
      %p89 = scmp.ne.s32.totalorder %s74, %s88
      %p90 = scmp.eq.s32.totalorder %s22, 0
      %p91 = por %p89, %p90
      %s92 = ssub.s32 %s16, %s23
      %p93 = scmp.eq.s32.totalorder %s92, 0
      %s95 = sadd.s32 %s94, 1
      %s96 = scalar_select %p93, %s94, %s95
      %p99 = pneg %p93
      %p100 = scmp.eq.s32.totalorder %s16, 1
      %p101 = por %p99, %p100
      %p102 = scmp.ne.s32.totalorder %s94, %s97
      %p103 = scmp.eq.s32.totalorder %s16, 0
      %p104 = por %p102, %p103
      %p105 = scmp.ne.s32.totalorder %s94, %s97
      %p106 = scmp.eq.s32.totalorder %s21, 1
      %p107 = por %p105, %p106
      %p108 = scmp.ne.s32.totalorder %s97, %s98
      %p109 = scmp.eq.s32.totalorder %s21, 0
      %p110 = por %p108, %p109
      %p111 = scmp.ne.s32.totalorder %s97, %s98
      %p112 = scmp.eq.s32.totalorder %s22, 1
      %p113 = por %p111, %p112
      %p115 = scmp.ne.s32.totalorder %s98, %s114
      %p116 = scmp.eq.s32.totalorder %s22, 0
      %p117 = por %p115, %p116
      %p118 = scmp.le.s32.totalorder 1, %s16
      %p119 = scmp.lt.s32.totalorder %s16, 3
      %p120 = pnand %p118, %p119
      %p121 = pneg %p120
      // Predicated region
      $region9: #{tpu_custom_call.1} parent=5 // pred_check
        _
      $region10: #{tpu_custom_call.1} parent=5 // pred_check_branch
        %123 = sbr.rel (%p120) target = $region12
      $region11: #{tpu_custom_call.1} parent=5 // pred_region
        %s124 = ssub.s32 %s16, 1
        // Predicated region
        $region13: #{tpu_custom_call.1} parent=11 // pred_check
          %p125 = pneg %p63
        $region14: #{tpu_custom_call.1} parent=11 // pred_check_branch
          %127 = sbr.rel (%p125) target = $region16
        $region15: #{tpu_custom_call.1} parent=11 // pred_region
          %129 = vsyncadd [#allocation6], 0
          %s130 = sshll.u32 %s1, 4
          %s131 = int_to_ptr.hbm [resolvable:$true] %s130
          %s132 = sshll.u32 [#allocation5], 4
          %s133 = int_to_ptr.vmem [resolvable:$true] %s132
          %138 = dma.hbm_to_vmem [thread:$0]  %s131, 2048, %s133, [#allocation6], 256, 256, 16
        $region16: #{tpu_custom_call.1} parent=11 // pred_fallthru
          _
        // Predicated region
        $region17: #{tpu_custom_call.1} parent=11 // pred_check
          %p139 = pneg %p84
        $region18: #{tpu_custom_call.1} parent=11 // pred_check_branch
          %141 = sbr.rel (%p139) target = $region20
        $region19: #{tpu_custom_call.1} parent=11 // pred_region
          %143 = vsyncadd [#allocation6], 0
          %s145 = sshll.u32 %s2, 4
          %s146 = int_to_ptr.hbm [resolvable:$true] %s145
          %s147 = sshll.u32 [#allocation7], 4
          %s148 = int_to_ptr.vmem [resolvable:$true] %s147
          %150 = dma.hbm_to_vmem [thread:$0]  %s146, 128, %s148, [#allocation6]
        $region20: #{tpu_custom_call.1} parent=11 // pred_fallthru
          _
      $region12: #{tpu_custom_call.1} parent=5 // pred_fallthru
        _
      %p151 = scmp.lt.s32.totalorder %s16, 2
      // Predicated region
      $region21: #{tpu_custom_call.1} parent=5 // pred_check
        %p152 = pneg %p151
      $region22: #{tpu_custom_call.1} parent=5 // pred_check_branch
        %154 = sbr.rel (%p152) target = $region24
      $region23: #{tpu_custom_call.1} parent=5 // pred_region
        // Predicated region
        $region25: #{tpu_custom_call.1} parent=23 // pred_check
          %p155 = pneg %p36
        $region26: #{tpu_custom_call.1} parent=23 // pred_check_branch
          %157 = sbr.rel (%p155) target = $region28
        $region27: #{tpu_custom_call.1} parent=23 // pred_region
          %s158 = sand.u32 %s26, 1
          %s159 = scalar_lea.sflag [#allocation3], %s158
          %s160 = sand.u32 %s26, 1
          %s161 = smul.addr %s160, 16
          %s162 = scalar_lea.vmem [#allocation2], %s161
          %164 = vsyncadd %s159, 0
          %s165 = smul.addr %s16, 2
          %s166 = smul.addr %s165, 8
          %s167 = scalar_lea.hbm %s0, %s166
          %s169 = sshll.u32 %s167, 4
          %s170 = int_to_ptr.hbm [resolvable:$true] %s169
          %s171 = sshll.u32 %s162, 4
          %s172 = int_to_ptr.vmem [resolvable:$true] %s171
          %174 = dma.hbm_to_vmem [thread:$0]  %s170, 256, %s172, %s159
        $region28: #{tpu_custom_call.1} parent=23 // pred_fallthru
          _
      $region24: #{tpu_custom_call.1} parent=5 // pred_fallthru
        _
      %p175 = scmp.le.s32.totalorder 1, %s16
      %p176 = scmp.lt.s32.totalorder %s16, 3
      %p177 = pnand %p175, %p176
      %p178 = pneg %p177
      // Predicated region
      $region29: #{tpu_custom_call.1} parent=5 // pred_check
        _
      $region30: #{tpu_custom_call.1} parent=5 // pred_check_branch
        %180 = sbr.rel (%p177) target = $region32
      $region31: #{tpu_custom_call.1} parent=5 // pred_region
        %s181 = ssub.s32 %s16, 1
        %s182 = sand.u32 %s29, 1
        %s183 = scalar_lea.sflag [#allocation3], %s182
        %s184 = sand.u32 %s29, 1
        %s185 = smul.addr %s184, 16
        %s186 = scalar_lea.vmem [#allocation2], %s185
        // Predicated region
        $region33: #{tpu_custom_call.1} parent=31 // pred_check
          %p187 = pneg %p42
        $region34: #{tpu_custom_call.1} parent=31 // pred_check_branch
          %189 = sbr.rel (%p187) target = $region36
        $region35: #{tpu_custom_call.1} parent=31 // pred_region
          %191 = dma.done %s183, 256
        $region36: #{tpu_custom_call.1} parent=31 // pred_fallthru
          _
        // Predicated region
        $region37: #{tpu_custom_call.1} parent=31 // pred_check
          %p192 = pneg %p63
        $region38: #{tpu_custom_call.1} parent=31 // pred_check_branch
          %194 = sbr.rel (%p192) target = $region40
        $region39: #{tpu_custom_call.1} parent=31 // pred_region
          %196 = dma.done [#allocation6], 2048
        $region40: #{tpu_custom_call.1} parent=31 // pred_fallthru
          _
        // Predicated region
        $region41: #{tpu_custom_call.1} parent=31 // pred_check
          %p197 = pneg %p84
        $region42: #{tpu_custom_call.1} parent=31 // pred_check_branch
          %199 = sbr.rel (%p197) target = $region44
        $region43: #{tpu_custom_call.1} parent=31 // pred_region
          %201 = dma.done [#allocation6], 128
        $region44: #{tpu_custom_call.1} parent=31 // pred_fallthru
          _
        %s202 = sand.u32 %s29, 1
        %s203 = scalar_lea.sflag [#allocation3], %s202
        %s204 = sand.u32 %s29, 1
        %s205 = smul.addr %s204, 16
        %s206 = scalar_lea.vmem [#allocation2], %s205
        %p207 = pneg %p42
        %p208 = pneg %p39
        %p209 = pneg %p63
        %p210 = pneg %p60
        %p211 = pneg %p84
        %p212 = pneg %p81
        %p213 = pneg %p110
        %p214 = pneg %p107
        %s215 = sand.u32 %s97, 1
        %s216 = scalar_lea.sflag [#allocation4], %s215
        %s217 = sand.u32 %s97, 1
        %s218 = smul.addr %s217, 16
        %s219 = scalar_lea.vmem [#allocation8], %s218
        %v220 = vld [vmem:[%s186] sm:$0xff]
        %v221 = vld [vmem:[%s186 + $0x8] sm:$0xff]
        %v222 = vld [vmem:[#allocation5] sm:$0xff]
        %v223 = vld [vmem:[#allocation5 + $0x8] sm:$0xff]
        %s224 = scalar_lea.vmem [#allocation5], 16
        %v225 = vld [vmem:[%s224] sm:$0xff]
        %v226 = vld [vmem:[%s224 + $0x8] sm:$0xff]
        %s227 = scalar_lea.vmem [#allocation5], 32
        %v228 = vld [vmem:[%s227] sm:$0xff]
        %v229 = vld [vmem:[%s227 + $0x8] sm:$0xff]
        %s230 = scalar_lea.vmem [#allocation5], 48
        %v231 = vld [vmem:[%s230] sm:$0xff]
        %v232 = vld [vmem:[%s230 + $0x8] sm:$0xff]
        %s233 = scalar_lea.vmem [#allocation5], 64
        %v234 = vld [vmem:[%s233] sm:$0xff]
        %v235 = vld [vmem:[%s233 + $0x8] sm:$0xff]
        %s236 = scalar_lea.vmem [#allocation5], 80
        %v237 = vld [vmem:[%s236] sm:$0xff]
        %v238 = vld [vmem:[%s236 + $0x8] sm:$0xff]
        %s239 = scalar_lea.vmem [#allocation5], 96
        %v240 = vld [vmem:[%s239] sm:$0xff]
        %v241 = vld [vmem:[%s239 + $0x8] sm:$0xff]
        %s242 = scalar_lea.vmem [#allocation5], 112
        %v243 = vld [vmem:[%s242] sm:$0xff]
        %v244 = vld [vmem:[%s242 + $0x8] sm:$0xff]
        %245 = vrot.lane.b32.xlu0 %v220, 16
        %v246 = vpop.permute.xlu0 %245
        %247 = vrot.lane.b32.xlu0 %v221, 16
        %v248 = vpop.permute.xlu0 %247
        %v249 = vlaneseq
        %v250 = vand.u32 %v249, 127
        %vm251 = vcmp.lt.s32.totalorder %v250, 16
        %v252 = vsel %vm251, %v246, %v248
        %v253 = vsel %vm251, %v248, %v246
        %254 = vrot.lane.b32.xlu0 %v220, 112
        %v255 = vpop.permute.xlu0 %254
        %256 = vrot.lane.b32.xlu0 %v221, 112
        %v257 = vpop.permute.xlu0 %256
        %vm258 = vcmp.lt.s32.totalorder %v250, 112
        %v259 = vsel %vm258, %v255, %v257
        %v260 = vsel %vm258, %v257, %v255
        %v261 = vmul.f32 %v222, %v253
        %v262 = vmul.f32 %v223, %v252
        %v263 = vmul.f32 %v225, %v220
        %v264 = vmul.f32 %v226, %v221
        %v265 = vadd.f32 %v261, %v263
        %v266 = vadd.f32 %v262, %v264
        %v267 = vmul.f32 %v228, %v259
        %v268 = vmul.f32 %v229, %v260
        %v269 = vadd.f32 %v265, %v267
        %v270 = vadd.f32 %v266, %v268
        %v271 = vadd.f32 %v269, %v231
        %v272 = vadd.f32 %v270, %v232
        %273 = vrot.lane.b32.xlu0 %v271, 16
        %v274 = vpop.permute.xlu0 %273
        %275 = vrot.lane.b32.xlu0 %v272, 16
        %v276 = vpop.permute.xlu0 %275
        %v277 = vsel %vm251, %v274, %v276
        %v278 = vsel %vm251, %v276, %v274
        %v279 = vadd.f32 %v271, %v278
        %v280 = vadd.f32 %v272, %v277
        %281 = vrot.lane.b32.xlu0 %v279, 32
        %v282 = vpop.permute.xlu0 %281
        %283 = vrot.lane.b32.xlu0 %v280, 32
        %v284 = vpop.permute.xlu0 %283
        %vm285 = vcmp.lt.s32.totalorder %v250, 32
        %v286 = vsel %vm285, %v282, %v284
        %v287 = vsel %vm285, %v284, %v282
        %v288 = vadd.f32 %v279, %v287
        %v289 = vadd.f32 %v280, %v286
        %290 = vrot.lane.b32.xlu0 %v288, 64
        %v291 = vpop.permute.xlu0 %290
        %292 = vrot.lane.b32.xlu0 %v289, 64
        %v293 = vpop.permute.xlu0 %292
        %vm294 = vcmp.lt.s32.totalorder %v250, 64
        %v295 = vsel %vm294, %v291, %v293
        %v296 = vsel %vm294, %v293, %v291
        %v297 = vadd.f32 %v288, %v296
        %v298 = vadd.f32 %v289, %v295
        %v299 = vadd.f32 %v297, %v298
        %v300 = vmul.f32 %v299, 0.0625
        %301 = vrot.lane.b32.xlu0 %v300, 1
        %v302 = vpop.permute.xlu0 %301
        %303 = vrot.lane.b32.xlu0 %v300, 127
        %v304 = vpop.permute.xlu0 %303
        %v305 = vmul.f32 %v234, %v302
        %v306 = vmul.f32 %v235, %v302
        %v307 = vmul.f32 %v237, %v300
        %v308 = vmul.f32 %v238, %v300
        %v309 = vadd.f32 %v305, %v307
        %v310 = vadd.f32 %v306, %v308
        %v311 = vmul.f32 %v240, %v304
        %v312 = vmul.f32 %v241, %v304
        %v313 = vadd.f32 %v309, %v311
        %v314 = vadd.f32 %v310, %v312
        %v315 = vadd.f32 %v313, %v243
        %v316 = vadd.f32 %v314, %v244
        %v317 = vmax.f32 %v315, 0.0
        %v318 = vmax.f32 %v316, 0.0
        %v319 = vld [vmem:[#allocation7] sm:$0xff]
        %vm320 = vcmask 64512
        %v322 = vsel %vm320, %v319, 0
        %324 = vmatpush.msra.mxu0 0.0
        %325 = vmatpush.msra.mxu0 0.0
        %326 = vmatpush.msra.mxu0 0.0
        %327 = vmatpush.msra.mxu0 0.0
        %328 = vmatpush.msra.mxu0 0.0
        %329 = vmatpush.msra.mxu0 0.0
        %330 = vmatpush.msra.mxu0 0.0
        %331 = vmatpush.msra.mxu0 0.0
        %332 = vmatpush.msra.mxu0 0.0
        %333 = vmatpush.msra.mxu0 0.0
        %334 = vmatpush.msra.mxu0 0.0
        %335 = vmatpush.msra.mxu0 0.0
        %336 = vmatpush.msra.mxu0 0.0
        %337 = vmatpush.msra.mxu0 0.0
        %338 = vmatpush.msra.mxu0 0.0
        %v339 = vand.u32 %v317, 4294901760
        %340 = vmatpush.msra.mxu0 %v339
        %v341 = vand.u32 %v322, 4294901760
        %v342 = vsub.f32 %v322, %v341
        %v343 = vand.u32 %v342, 4294901760
        %v344 = vsub.f32 %v342, %v343
        %v345 = vand.u32 %v344, 4294901760
        %346 = vmatmul.f32.gmra.mxu0 %v345
        %v347 = vpop.f32.mrf.mxu0
        %v348 = vadd.f32 0.0, %v347
        %349 = vdwg.mxu0
        %350 = vmatpush.msra.mxu0 0.0
        %351 = vmatpush.msra.mxu0 0.0
        %352 = vmatpush.msra.mxu0 0.0
        %353 = vmatpush.msra.mxu0 0.0
        %354 = vmatpush.msra.mxu0 0.0
        %355 = vmatpush.msra.mxu0 0.0
        %356 = vmatpush.msra.mxu0 0.0
        %357 = vmatpush.msra.mxu0 0.0
        %358 = vmatpush.msra.mxu0 0.0
        %359 = vmatpush.msra.mxu0 0.0
        %360 = vmatpush.msra.mxu0 0.0
        %361 = vmatpush.msra.mxu0 0.0
        %362 = vmatpush.msra.mxu0 0.0
        %363 = vmatpush.msra.mxu0 0.0
        %364 = vmatpush.msra.mxu0 0.0
        %v365 = vand.u32 %v317, 4294901760
        %v366 = vsub.f32 %v317, %v365
        %v367 = vand.u32 %v366, 4294901760
        %v368 = vsub.f32 %v366, %v367
        %v369 = vand.u32 %v368, 4294901760
        %370 = vmatpush.msra.mxu0 %v369
        %v371 = vand.u32 %v322, 4294901760
        %372 = vmatmul.f32.gmra.mxu0 %v371
        %v373 = vpop.f32.mrf.mxu0
        %v374 = vadd.f32 %v348, %v373
        %375 = vdwg.mxu0
        %376 = vmatpush.msra.mxu0 0.0
        %377 = vmatpush.msra.mxu0 0.0
        %378 = vmatpush.msra.mxu0 0.0
        %379 = vmatpush.msra.mxu0 0.0
        %380 = vmatpush.msra.mxu0 0.0
        %381 = vmatpush.msra.mxu0 0.0
        %382 = vmatpush.msra.mxu0 0.0
        %383 = vmatpush.msra.mxu0 0.0
        %384 = vmatpush.msra.mxu0 0.0
        %385 = vmatpush.msra.mxu0 0.0
        %386 = vmatpush.msra.mxu0 0.0
        %387 = vmatpush.msra.mxu0 0.0
        %388 = vmatpush.msra.mxu0 0.0
        %389 = vmatpush.msra.mxu0 0.0
        %390 = vmatpush.msra.mxu0 0.0
        %v391 = vand.u32 %v317, 4294901760
        %v392 = vsub.f32 %v317, %v391
        %393 = vmatpush.msra.mxu0 %v392
        %v394 = vand.u32 %v322, 4294901760
        %v395 = vsub.f32 %v322, %v394
        %396 = vmatmul.f32.gmra.mxu0 %v395
        %v397 = vpop.f32.mrf.mxu0
        %v398 = vadd.f32 %v374, %v397
        %399 = vdwg.mxu0
        %400 = vmatpush.msra.mxu0 0.0
        %401 = vmatpush.msra.mxu0 0.0
        %402 = vmatpush.msra.mxu0 0.0
        %403 = vmatpush.msra.mxu0 0.0
        %404 = vmatpush.msra.mxu0 0.0
        %405 = vmatpush.msra.mxu0 0.0
        %406 = vmatpush.msra.mxu0 0.0
        %407 = vmatpush.msra.mxu0 0.0
        %408 = vmatpush.msra.mxu0 0.0
        %409 = vmatpush.msra.mxu0 0.0
        %410 = vmatpush.msra.mxu0 0.0
        %411 = vmatpush.msra.mxu0 0.0
        %412 = vmatpush.msra.mxu0 0.0
        %413 = vmatpush.msra.mxu0 0.0
        %414 = vmatpush.msra.mxu0 0.0
        %v415 = vand.u32 %v317, 4294901760
        %416 = vmatpush.msra.mxu0 %v415
        %v417 = vand.u32 %v322, 4294901760
        %v418 = vsub.f32 %v322, %v417
        %v419 = vand.u32 %v418, 4294901760
        %420 = vmatmul.f32.gmra.mxu0 %v419
        %v421 = vpop.f32.mrf.mxu0
        %v422 = vadd.f32 %v398, %v421
        %423 = vdwg.mxu0
        %424 = vmatpush.msra.mxu0 0.0
        %425 = vmatpush.msra.mxu0 0.0
        %426 = vmatpush.msra.mxu0 0.0
        %427 = vmatpush.msra.mxu0 0.0
        %428 = vmatpush.msra.mxu0 0.0
        %429 = vmatpush.msra.mxu0 0.0
        %430 = vmatpush.msra.mxu0 0.0
        %431 = vmatpush.msra.mxu0 0.0
        %432 = vmatpush.msra.mxu0 0.0
        %433 = vmatpush.msra.mxu0 0.0
        %434 = vmatpush.msra.mxu0 0.0
        %435 = vmatpush.msra.mxu0 0.0
        %436 = vmatpush.msra.mxu0 0.0
        %437 = vmatpush.msra.mxu0 0.0
        %438 = vmatpush.msra.mxu0 0.0
        %v439 = vand.u32 %v317, 4294901760
        %v440 = vsub.f32 %v317, %v439
        %v441 = vand.u32 %v440, 4294901760
        %442 = vmatpush.msra.mxu0 %v441
        %v443 = vand.u32 %v322, 4294901760
        %444 = vmatmul.f32.gmra.mxu0 %v443
        %v445 = vpop.f32.mrf.mxu0
        %v446 = vadd.f32 %v422, %v445
        %447 = vdwg.mxu0
        %448 = vmatpush.msra.mxu0 0.0
        %449 = vmatpush.msra.mxu0 0.0
        %450 = vmatpush.msra.mxu0 0.0
        %451 = vmatpush.msra.mxu0 0.0
        %452 = vmatpush.msra.mxu0 0.0
        %453 = vmatpush.msra.mxu0 0.0
        %454 = vmatpush.msra.mxu0 0.0
        %455 = vmatpush.msra.mxu0 0.0
        %456 = vmatpush.msra.mxu0 0.0
        %457 = vmatpush.msra.mxu0 0.0
        %458 = vmatpush.msra.mxu0 0.0
        %459 = vmatpush.msra.mxu0 0.0
        %460 = vmatpush.msra.mxu0 0.0
        %461 = vmatpush.msra.mxu0 0.0
        %462 = vmatpush.msra.mxu0 0.0
        %v463 = vand.u32 %v317, 4294901760
        %464 = vmatpush.msra.mxu0 %v463
        %v465 = vand.u32 %v322, 4294901760
        %466 = vmatmul.f32.gmra.mxu0 %v465
        %v467 = vpop.f32.mrf.mxu0
        %v468 = vadd.f32 %v446, %v467
        %469 = vdwg.mxu0
        %470 = vmatpush.msra.mxu0 0.0
        %471 = vmatpush.msra.mxu0 0.0
        %472 = vmatpush.msra.mxu0 0.0
        %473 = vmatpush.msra.mxu0 0.0
        %474 = vmatpush.msra.mxu0 0.0
        %475 = vmatpush.msra.mxu0 0.0
        %476 = vmatpush.msra.mxu0 0.0
        %477 = vmatpush.msra.mxu0 0.0
        %478 = vmatpush.msra.mxu0 0.0
        %479 = vmatpush.msra.mxu0 0.0
        %480 = vmatpush.msra.mxu0 0.0
        %481 = vmatpush.msra.mxu0 0.0
        %482 = vmatpush.msra.mxu0 0.0
        %483 = vmatpush.msra.mxu0 0.0
        %484 = vmatpush.msra.mxu0 0.0
        %v485 = vand.u32 %v318, 4294901760
        %486 = vmatpush.msra.mxu0 %v485
        %v487 = vand.u32 %v322, 4294901760
        %v488 = vsub.f32 %v322, %v487
        %v489 = vand.u32 %v488, 4294901760
        %v490 = vsub.f32 %v488, %v489
        %v491 = vand.u32 %v490, 4294901760
        %492 = vmatmul.f32.gmra.mxu0 %v491
        %v493 = vpop.f32.mrf.mxu0
        %v494 = vadd.f32 0.0, %v493
        %495 = vdwg.mxu0
        %496 = vmatpush.msra.mxu0 0.0
        %497 = vmatpush.msra.mxu0 0.0
        %498 = vmatpush.msra.mxu0 0.0
        %499 = vmatpush.msra.mxu0 0.0
        %500 = vmatpush.msra.mxu0 0.0
        %501 = vmatpush.msra.mxu0 0.0
        %502 = vmatpush.msra.mxu0 0.0
        %503 = vmatpush.msra.mxu0 0.0
        %504 = vmatpush.msra.mxu0 0.0
        %505 = vmatpush.msra.mxu0 0.0
        %506 = vmatpush.msra.mxu0 0.0
        %507 = vmatpush.msra.mxu0 0.0
        %508 = vmatpush.msra.mxu0 0.0
        %509 = vmatpush.msra.mxu0 0.0
        %510 = vmatpush.msra.mxu0 0.0
        %v511 = vand.u32 %v318, 4294901760
        %v512 = vsub.f32 %v318, %v511
        %v513 = vand.u32 %v512, 4294901760
        %v514 = vsub.f32 %v512, %v513
        %v515 = vand.u32 %v514, 4294901760
        %516 = vmatpush.msra.mxu0 %v515
        %v517 = vand.u32 %v322, 4294901760
        %518 = vmatmul.f32.gmra.mxu0 %v517
        %v519 = vpop.f32.mrf.mxu0
        %v520 = vadd.f32 %v494, %v519
        %521 = vdwg.mxu0
        %522 = vmatpush.msra.mxu0 0.0
        %523 = vmatpush.msra.mxu0 0.0
        %524 = vmatpush.msra.mxu0 0.0
        %525 = vmatpush.msra.mxu0 0.0
        %526 = vmatpush.msra.mxu0 0.0
        %527 = vmatpush.msra.mxu0 0.0
        %528 = vmatpush.msra.mxu0 0.0
        %529 = vmatpush.msra.mxu0 0.0
        %530 = vmatpush.msra.mxu0 0.0
        %531 = vmatpush.msra.mxu0 0.0
        %532 = vmatpush.msra.mxu0 0.0
        %533 = vmatpush.msra.mxu0 0.0
        %534 = vmatpush.msra.mxu0 0.0
        %535 = vmatpush.msra.mxu0 0.0
        %536 = vmatpush.msra.mxu0 0.0
        %v537 = vand.u32 %v318, 4294901760
        %v538 = vsub.f32 %v318, %v537
        %539 = vmatpush.msra.mxu0 %v538
        %v540 = vand.u32 %v322, 4294901760
        %v541 = vsub.f32 %v322, %v540
        %542 = vmatmul.f32.gmra.mxu0 %v541
        %v543 = vpop.f32.mrf.mxu0
        %v544 = vadd.f32 %v520, %v543
        %545 = vdwg.mxu0
        %546 = vmatpush.msra.mxu0 0.0
        %547 = vmatpush.msra.mxu0 0.0
        %548 = vmatpush.msra.mxu0 0.0
        %549 = vmatpush.msra.mxu0 0.0
        %550 = vmatpush.msra.mxu0 0.0
        %551 = vmatpush.msra.mxu0 0.0
        %552 = vmatpush.msra.mxu0 0.0
        %553 = vmatpush.msra.mxu0 0.0
        %554 = vmatpush.msra.mxu0 0.0
        %555 = vmatpush.msra.mxu0 0.0
        %556 = vmatpush.msra.mxu0 0.0
        %557 = vmatpush.msra.mxu0 0.0
        %558 = vmatpush.msra.mxu0 0.0
        %559 = vmatpush.msra.mxu0 0.0
        %560 = vmatpush.msra.mxu0 0.0
        %v561 = vand.u32 %v318, 4294901760
        %562 = vmatpush.msra.mxu0 %v561
        %v563 = vand.u32 %v322, 4294901760
        %v564 = vsub.f32 %v322, %v563
        %v565 = vand.u32 %v564, 4294901760
        %566 = vmatmul.f32.gmra.mxu0 %v565
        %v567 = vpop.f32.mrf.mxu0
        %v568 = vadd.f32 %v544, %v567
        %569 = vdwg.mxu0
        %570 = vmatpush.msra.mxu0 0.0
        %571 = vmatpush.msra.mxu0 0.0
        %572 = vmatpush.msra.mxu0 0.0
        %573 = vmatpush.msra.mxu0 0.0
        %574 = vmatpush.msra.mxu0 0.0
        %575 = vmatpush.msra.mxu0 0.0
        %576 = vmatpush.msra.mxu0 0.0
        %577 = vmatpush.msra.mxu0 0.0
        %578 = vmatpush.msra.mxu0 0.0
        %579 = vmatpush.msra.mxu0 0.0
        %580 = vmatpush.msra.mxu0 0.0
        %581 = vmatpush.msra.mxu0 0.0
        %582 = vmatpush.msra.mxu0 0.0
        %583 = vmatpush.msra.mxu0 0.0
        %584 = vmatpush.msra.mxu0 0.0
        %v585 = vand.u32 %v318, 4294901760
        %v586 = vsub.f32 %v318, %v585
        %v587 = vand.u32 %v586, 4294901760
        %588 = vmatpush.msra.mxu0 %v587
        %v589 = vand.u32 %v322, 4294901760
        %590 = vmatmul.f32.gmra.mxu0 %v589
        %v591 = vpop.f32.mrf.mxu0
        %v592 = vadd.f32 %v568, %v591
        %593 = vdwg.mxu0
        %594 = vmatpush.msra.mxu0 0.0
        %595 = vmatpush.msra.mxu0 0.0
        %596 = vmatpush.msra.mxu0 0.0
        %597 = vmatpush.msra.mxu0 0.0
        %598 = vmatpush.msra.mxu0 0.0
        %599 = vmatpush.msra.mxu0 0.0
        %600 = vmatpush.msra.mxu0 0.0
        %601 = vmatpush.msra.mxu0 0.0
        %602 = vmatpush.msra.mxu0 0.0
        %603 = vmatpush.msra.mxu0 0.0
        %604 = vmatpush.msra.mxu0 0.0
        %605 = vmatpush.msra.mxu0 0.0
        %606 = vmatpush.msra.mxu0 0.0
        %607 = vmatpush.msra.mxu0 0.0
        %608 = vmatpush.msra.mxu0 0.0
        %v609 = vand.u32 %v318, 4294901760
        %610 = vmatpush.msra.mxu0 %v609
        %v611 = vand.u32 %v322, 4294901760
        %612 = vmatmul.f32.gmra.mxu0 %v611
        %v613 = vpop.f32.mrf.mxu0
        %v614 = vadd.f32 %v592, %v613
        %615 = vdwg.mxu0
        %v616 = vadd.f32 %v271, %v468
        %v617 = vadd.f32 %v272, %v614
        %v618 = vmax.f32 %v616, 0.0
        %v619 = vmax.f32 %v617, 0.0
        %620 = vst [vmem:[%s219] sm:$0xff] %v618
        %621 = vst [vmem:[%s219 + $0x8] sm:$0xff] %v619
        %s622 = sand.u32 %s97, 1
        %s623 = scalar_lea.sflag [#allocation4], %s622
        %s624 = sand.u32 %s97, 1
        %s625 = smul.addr %s624, 16
        %s626 = scalar_lea.vmem [#allocation8], %s625
        // Predicated region
        $region45: #{tpu_custom_call.1} parent=31 // pred_check
          %p627 = pneg %p107
        $region46: #{tpu_custom_call.1} parent=31 // pred_check_branch
          %629 = sbr.rel (%p627) target = $region48
        $region47: #{tpu_custom_call.1} parent=31 // pred_region
          %631 = vsyncadd %s623, 0
          %s632 = smul.addr %s21, 2
          %s633 = smul.addr %s632, 8
          %s634 = scalar_lea.hbm %s3, %s633
          %s636 = sshll.u32 %s626, 4
          %s637 = int_to_ptr.vmem [resolvable:$true] %s636
          %s638 = sshll.u32 %s634, 4
          %s639 = int_to_ptr.hbm [resolvable:$true] %s638
          %641 = dma.vmem_to_hbm [thread:$0]  %s637, 256, %s639, %s623
        $region48: #{tpu_custom_call.1} parent=31 // pred_fallthru
          _
      $region32: #{tpu_custom_call.1} parent=5 // pred_fallthru
        _
      %p642 = scmp.le.s32.totalorder 2, %s16
      // Predicated region
      $region49: #{tpu_custom_call.1} parent=5 // pred_check
        %p643 = pneg %p642
      $region50: #{tpu_custom_call.1} parent=5 // pred_check_branch
        %645 = sbr.rel (%p643) target = $region52
      $region51: #{tpu_custom_call.1} parent=5 // pred_region
        %s646 = ssub.s32 %s16, 2
        // Predicated region
        $region53: #{tpu_custom_call.1} parent=51 // pred_check
          %p647 = pneg %p113
        $region54: #{tpu_custom_call.1} parent=51 // pred_check_branch
          %649 = sbr.rel (%p647) target = $region56
        $region55: #{tpu_custom_call.1} parent=51 // pred_region
          %s650 = sand.u32 %s98, 1
          %s651 = scalar_lea.sflag [#allocation4], %s650
          %s652 = sand.u32 %s98, 1
          %s653 = smul.addr %s652, 16
          %s654 = scalar_lea.vmem [#allocation8], %s653
          %656 = dma.done %s651, 256
        $region56: #{tpu_custom_call.1} parent=51 // pred_fallthru
          _
      $region52: #{tpu_custom_call.1} parent=5 // pred_fallthru
        _
    $region6: #{tpu_custom_call.1} parent=1 // loop_footer
      %s20 = sadd.s32 1, %s16
    $region7: #{tpu_custom_call.1} parent=1 // loop_footer_branch
      %15 = sbr.rel target = $region3
    $region8: #{tpu_custom_call.1} parent=1 // loop_exit
      _
    %657 = vsyncpa [#allocation3], 1
    %s658 = scalar_lea.sflag [#allocation3], 1
    %659 = vsyncpa %s658, 1
    %660 = vsyncpa [#allocation6], 1
    %661 = vsyncpa [#allocation4], 1
    %s662 = scalar_lea.sflag [#allocation4], 1
    %663 = vsyncpa %s662, 1

</llo_original>
